<compile_context>
chip_gen: v7x
topology: tpu7x:2x2x1
jax: 0.10.0
libtpu: 0.0.40
codegen_flags: <defaults>
</compile_context>

<pallas_src>
import math

import jax
import jax.numpy as jnp
from jax.experimental import pallas as pl
from jax.experimental.pallas import tpu as pltpu

_LANE = 128


def _make_wbce_kernel(has_pw, rem_last, row_tile, lane):
    """rem_last: #valid elements in the last grid block (static Python int)."""
    block_elems = row_tile * lane
    needs_mask = rem_last != block_elems

    def kernel(*refs):
        if has_pw:
            x_ref, t_ref, pw_ref, out_ref = refs
        else:
            x_ref, t_ref, out_ref = refs

        # Widen to f32 in-kernel (inputs stay in native dtype in HBM).
        x = x_ref[...].astype(jnp.float32)
        t = t_ref[...].astype(jnp.float32)

        # Numerically stable softplus(-x) = max(-x, 0) + log1p(exp(-|x|)).
        sp_neg_x = jnp.maximum(-x, 0.0) + jnp.log1p(jnp.exp(-jnp.abs(x)))

        # BCE-with-logits:
        #   loss = (1 - t) * x + (1 + (pos_weight - 1) * t) * softplus(-x)
        if has_pw:
            pw = pw_ref[...].astype(jnp.float32)
            loss = (1.0 - t) * x + (1.0 + (pw - 1.0) * t) * sp_neg_x
        else:
            loss = (1.0 - t) * x + sp_neg_x

        if not needs_mask:
            # Every block is fully valid: plain partial sum, no iota anywhere.
            out_ref[0] = jnp.sum(loss, axis=0, keepdims=True)
        else:
            i = pl.program_id(0)
            last = pl.num_programs(0) - 1

            @pl.when(i < last)
            def _():
                out_ref[0] = jnp.sum(loss, axis=0, keepdims=True)

            @pl.when(i == last)
            def _():
                # Block-local mask: only the last block has padded / ragged
                # elements.  Use select (not multiply) so garbage lanes can
                # never propagate NaN/inf into the sum.
                r = jax.lax.broadcasted_iota(jnp.int32, loss.shape, 0)
                c = jax.lax.broadcasted_iota(jnp.int32, loss.shape, 1)
                valid = (r * lane + c) < rem_last
                out_ref[0] = jnp.sum(jnp.where(valid, loss, 0.0),
                                     axis=0, keepdims=True)

    return kernel


def weighted_bce_loss(logits, targets, pos_weight=None, reduction="mean"):
    """Weighted BCE-with-logits over arbitrarily shaped logits/targets."""
    if logits.shape != targets.shape:
        raise ValueError(
            f"Shape mismatch: logits {logits.shape} vs targets {targets.shape}")
    if reduction not in ("mean", "sum"):
        # TODO(synk): reduction='none' (elementwise loss output) not implemented.
        raise NotImplementedError(f"reduction={reduction!r} not supported")

    n = int(logits.size)
    if n == 0:
        return jnp.float32(jnp.nan) if reduction == "mean" else jnp.float32(0.0)

    lane = _LANE
    x = logits.reshape(-1)      # free reshape, native dtype
    t = targets.reshape(-1)

    # ---- pos_weight: keep it tiny (block-periodic pattern) when possible ----
    has_pw = pos_weight is not None
    pw_mode = None
    pw_c = None
    pw_full = None
    C = int(logits.shape[-1]) if logits.ndim > 0 else 1
    if has_pw:
        pw_arr = jnp.asarray(pos_weight, jnp.float32)
        if pw_arr.ndim <= 1 and pw_arr.size in (1, C):
            pw_mode = "pattern"          # scalar or per-class weights (common)
            pw_c = jnp.broadcast_to(pw_arr.reshape(-1), (C,))
        else:
            pw_mode = "stream"           # rare fallback: full materialization

    # ---- block size ----------------------------------------------------------
    # 2 MiB blocks (2 streams) without pos_weight, ~1 MiB (3 streams) with it,
    # so 2 buffers/stream always fit v5e's 16 MiB default scoped VMEM.
    base_rows = 2048 if has_pw else 4096
    unit = 32                             # sublane multiple safe for f32/bf16/int8
    if pw_mode == "pattern":
        per = C // math.gcd(C, lane)      # block_elems % C == 0 <=> row_tile % per == 0
        unit_pat = unit * per // math.gcd(unit, per)
        if unit_pat <= 4096:
            unit = unit_pat
        else:
            pw_mode = "stream"            # pathological class count: fall back
    if pw_mode == "stream":
        pw_full = jnp.broadcast_to(jnp.asarray(pos_weight, jnp.float32),
                                   logits.shape).reshape(-1)

    rows = -(-n // lane)
    n_pad = rows * lane - n
    arrays = [x, t] + ([pw_full] if pw_mode == "stream" else [])
    if n_pad:
        # Only non-128-aligned sizes pay this extra HBM round trip (tail < 128 elems).
        arrays = [jnp.pad(a, (0, n_pad)) for a in arrays]
    arrays = [a.reshape(rows, lane) for a in arrays]

    row_tile = unit * max(1, base_rows // unit)
    if rows <= row_tile:
        row_tile = rows                   # single (possibly ragged/padded) block
        grid = 1
    else:
        grid = -(-rows // row_tile)
    rem_last = n - (grid - 1) * row_tile * lane   # valid elems in last block

    stream_spec = pl.BlockSpec((row_tile, lane), lambda i: (i, 0))
    in_specs = [stream_spec, stream_spec]
    inputs = list(arrays[:2])
    if has_pw:
        if pw_mode == "pattern":
            pat_elems = row_tile * lane
            reps = -(-pat_elems // C)
            pw_pat = jnp.tile(pw_c, reps)[:pat_elems].reshape(row_tile, lane)
            # Constant block index -> VMEM-resident; read from HBM only once.
            in_specs.append(pl.BlockSpec((row_tile, lane), lambda i: (0, 0)))
            inputs.append(pw_pat)
        else:
            in_specs.append(stream_spec)
            inputs.append(arrays[2])

    kernel = _make_wbce_kernel(has_pw, rem_last, row_tile, lane)

    partials = pl.pallas_call(
        kernel,
        out_shape=jax.ShapeDtypeStruct((grid, 1, lane), jnp.float32),
        grid_spec=pltpu.PrefetchScalarGridSpec(
            num_scalar_prefetch=0,
            grid=(grid,),
            in_specs=in_specs,
            out_specs=pl.BlockSpec((1, 1, lane), lambda i: (i, 0, 0)),
        ),
        compiler_params=pltpu.CompilerParams(
            dimension_semantics=("parallel",),   # independent partials -> both TCs on v7x
        ),
    )(*inputs)

    total = jnp.sum(partials)
    if reduction == "mean":
        return total / jnp.float32(n)
    return total


def _wbce_ref(logits, targets, pos_weight=None):
    """Pure-JAX reference mirroring torch binary_cross_entropy_with_logits (mean)."""
    x = logits.astype(jnp.float32)
    t = targets.astype(jnp.float32)
    sp_neg_x = jnp.maximum(-x, 0.0) + jnp.log1p(jnp.exp(-jnp.abs(x)))
    if pos_weight is None:
        loss = (1.0 - t) * x + sp_neg_x
    else:
        pw = jnp.asarray(pos_weight, jnp.float32)
        loss = (1.0 - t) * x + (1.0 + (pw - 1.0) * t) * sp_neg_x
    return loss.mean()


if __name__ == "__main__":
    key = jax.random.PRNGKey(0)
    k1, k2, k3, k4, k5, k6, k7 = jax.random.split(key, 7)

    # [batch_size, seq_len, num_classes]
    B, S, C = 2, 8, 32
    logits = jax.random.normal(k1, (B, S, C), dtype=jnp.float32) * 2.0
    targets = jax.random.bernoulli(k2, p=0.3, shape=(B, S, C)).astype(jnp.float32)

    # 1) Default (pos_weight=None), 128-aligned size -> no pad, no mask.
    loss = jax.block_until_ready(weighted_bce_loss(logits, targets))
    ref = _wbce_ref(logits, targets)
    assert jnp.allclose(loss, ref, rtol=1e-5, atol=1e-6), (loss, ref)

    # 2) Per-class pos_weight (VMEM-resident periodic pattern path).
    pos_weight = jax.random.uniform(k3, (C,), minval=0.5, maxval=3.0, dtype=jnp.float32)
    loss_pw = jax.block_until_ready(weighted_bce_loss(logits, targets, pos_weight))
    ref_pw = _wbce_ref(logits, targets, pos_weight)
    assert jnp.allclose(loss_pw, ref_pw, rtol=1e-5, atol=1e-6), (loss_pw, ref_pw)

    # 3) Non-128-divisible size (exercises tail pad + last-block mask).
    B2, S2, C2 = 3, 7, 33
    logits2 = jax.random.normal(k4, (B2, S2, C2), dtype=jnp.float32) * 1.5
    targets2 = jax.random.bernoulli(k5, p=0.4, shape=(B2, S2, C2)).astype(jnp.float32)
    loss2 = jax.block_until_ready(weighted_bce_loss(logits2, targets2))
    ref2 = _wbce_ref(logits2, targets2)
    assert jnp.allclose(loss2, ref2, rtol=1e-5, atol=1e-6), (loss2, ref2)

    pos_weight2 = jax.random.uniform(k6, (C2,), minval=0.5, maxval=3.0, dtype=jnp.float32)
    loss2_pw = jax.block_until_ready(weighted_bce_loss(logits2, targets2, pos_weight2))
    ref2_pw = _wbce_ref(logits2, targets2, pos_weight2)
    assert jnp.allclose(loss2_pw, ref2_pw, rtol=1e-5, atol=1e-6), (loss2_pw, ref2_pw)

    # 4) Native bf16 logits (in-kernel widen; no wrapper astype copy).
    logits_bf16 = logits.astype(jnp.bfloat16)
    loss_bf16 = jax.block_until_ready(weighted_bce_loss(logits_bf16, targets, pos_weight))
    ref_bf16 = _wbce_ref(logits_bf16.astype(jnp.float32), targets, pos_weight)
    assert jnp.allclose(loss_bf16, ref_bf16, rtol=1e-4, atol=1e-5), (loss_bf16, ref_bf16)

    # 5) Multi-block case (grid > 1, ragged last block, no pad, pattern pos_weight).
    B3, S3, C3 = 16, 128, 192
    logits3 = jax.random.normal(k7, (B3, S3, C3), dtype=jnp.float32)
    targets3 = jax.random.bernoulli(k2, p=0.2, shape=(B3, S3, C3)).astype(jnp.float32)
    pos_weight3 = jnp.linspace(0.5, 2.5, C3, dtype=jnp.float32)
    loss3 = jax.block_until_ready(weighted_bce_loss(logits3, targets3, pos_weight3))
    ref3 = _wbce_ref(logits3, targets3, pos_weight3)
    assert jnp.allclose(loss3, ref3, rtol=1e-5, atol=1e-6), (loss3, ref3)

    print("KERNEL_OK")
</pallas_src>

<mosaic_0001>
module attributes {stable_mosaic.version = 11 : i64} {
  func.func @kernel(%arg0: i32, %arg1: memref<4x128xf32, #tpu.memory_space<vmem>>, %arg2: memref<4x128xf32, #tpu.memory_space<vmem>>, %arg3: memref<1x1x128xf32, #tpu.memory_space<vmem>>) attributes {dimension_semantics = [#tpu.dimension_semantics<parallel>], iteration_bounds = array<i64: 1>, scalar_prefetch = 0 : i64, scratch_operands = 0 : i64, tpu.core_type = #tpu.core_type<tc>, window_params = [{transform_indices = @transform_0, window_bounds = array<i64: 4, 128>}, {transform_indices = @transform_1, window_bounds = array<i64: 4, 128>}, {transform_indices = @transform_2, window_bounds = array<i64: 1, 1, 128>}]} {
    %c0 = arith.constant 0 : index
    %c0_0 = arith.constant 0 : index
    %0 = vector.load %arg1[%c0, %c0_0] : memref<4x128xf32, #tpu.memory_space<vmem>>, vector<4x128xf32>
    %c0_1 = arith.constant 0 : index
    %c0_2 = arith.constant 0 : index
    %1 = vector.load %arg2[%c0_1, %c0_2] : memref<4x128xf32, #tpu.memory_space<vmem>>, vector<4x128xf32>
    %cst = arith.constant 0.000000e+00 : f32
    %2 = vector.broadcast %cst : f32 to vector<4x128xf32>
    %3 = arith.subf %2, %0 : vector<4x128xf32>
    %cst_3 = arith.constant 0.000000e+00 : f32
    %4 = vector.broadcast %cst_3 : f32 to vector<4x128xf32>
    %5 = arith.maximumf %3, %4 : vector<4x128xf32>
    %6 = math.absf %0 : vector<4x128xf32>
    %cst_4 = arith.constant 0.000000e+00 : f32
    %7 = vector.broadcast %cst_4 : f32 to vector<4x128xf32>
    %8 = arith.subf %7, %6 : vector<4x128xf32>
    %9 = math.exp %8 : vector<4x128xf32>
    %10 = math.log1p %9 : vector<4x128xf32>
    %11 = arith.addf %5, %10 : vector<4x128xf32>
    %cst_5 = arith.constant 1.000000e+00 : f32
    %12 = vector.broadcast %cst_5 : f32 to vector<4x128xf32>
    %13 = arith.subf %12, %1 : vector<4x128xf32>
    %14 = arith.mulf %13, %0 : vector<4x128xf32>
    %15 = arith.addf %14, %11 : vector<4x128xf32>
    %cst_6 = arith.constant dense<0.000000e+00> : vector<128xf32>
    %16 = vector.multi_reduction <add>, %15, %cst_6 [0] : vector<4x128xf32> to vector<128xf32>
    %17 = vector.shape_cast %16 : vector<128xf32> to vector<1x128xf32>
    %c0_7 = arith.constant 0 : index
    %c0_8 = arith.constant 0 : index
    %c0_9 = arith.constant 0 : index
    %18 = vector.load %arg3[%c0_7, %c0_8, %c0_9] : memref<1x1x128xf32, #tpu.memory_space<vmem>>, vector<1x1x128xf32>
    %19 = vector.shape_cast %18 : vector<1x1x128xf32> to vector<1x128xf32>
    %20 = vector.shape_cast %17 : vector<1x128xf32> to vector<1x1x128xf32>
    tpu.vector_store %arg3[%c0_7, %c0_8, %c0_9], %20 {strides = array<i32>} : memref<1x1x128xf32, #tpu.memory_space<vmem>>, vector<1x1x128xf32>,
    return
  }
  func.func @transform_0(%arg0: i32) -> (i32, i32) {
    %c0_i32 = arith.constant 0 : i32
    %c0_i32_0 = arith.constant 0 : i32
    return %arg0, %c0_i32 : i32, i32
  }
  func.func @transform_1(%arg0: i32) -> (i32, i32) {
    %c0_i32 = arith.constant 0 : i32
    %c0_i32_0 = arith.constant 0 : i32
    return %arg0, %c0_i32 : i32, i32
  }
  func.func @transform_2(%arg0: i32) -> (i32, i32, i32) {
    %c0_i32 = arith.constant 0 : i32
    %c0_i32_0 = arith.constant 0 : i32
    %c0_i32_1 = arith.constant 0 : i32
    return %arg0, %c0_i32, %c0_i32_0 : i32, i32, i32
  }
}

</mosaic_0001>

<llo_original>
// kernel: tpu_custom_call.1
$region0: #{tpu_custom_call.1}
  #allocation0 [shape = 'u32[]', space=smem, size = 0x4, offset = 0x4, fixed_abs, tag = 'smem constant byte address 0x4 - core index']
  #allocation1 [shape = 'u32[144,128]{1,0:T(1,128)}', space=vmem, size = 0x12000, scoped, tag = 'internal scratch']
  %s0 = inlined_call_operand.hbm [shape: f32[4,128], index: 0, kind: input, shape index: {}]
  %s1 = inlined_call_operand.hbm [shape: f32[4,128], index: 1, kind: input, shape index: {}]
  %s2 = inlined_call_operand.hbm [shape: f32[1,1,128], index: 2, kind: output, shape index: {}]
  %s3 = sld [smem:[#allocation0]]
  $region26: #{tpu_custom_call.1} parent=0
    _
  %s5 = ssub.s32 1, %s3
  %s6 = scalar_select 0, %s5, %s3
  $region1: #{tpu_custom_call.1} parent=0
    #allocation2 [shape = 'u8[2048]{0}', space=vmem, size = 0x800, scoped, tag = 'input window, operand 0, single buffered']
    #allocation3 [shape = 's32[1]{0}', space=sflag, size = 0x4, scoped, tag = 'scoped memory for tpu_custom_call.1']
    #allocation4 [shape = 's32[1]{0}', space=sflag, size = 0x4, scoped, tag = 'scoped memory for tpu_custom_call.1']
    #allocation5 [shape = 'u8[2048]{0}', space=vmem, size = 0x800, scoped, tag = 'input window, operand 1, single buffered']
    #allocation6 [shape = 's32[1]{0}', space=sflag, size = 0x4, scoped, tag = 'scoped memory for tpu_custom_call.1']
    #allocation7 [shape = 'u8[512]{0}', space=vmem, size = 0x400, scoped, tag = 'output window, operand 0, single buffered']
    %7 = vsyncpa [#allocation3], 0
    %8 = vsyncpa [#allocation6], 0
    %9 = vsyncpa [#allocation4], 0
    // Predicated region
    $region2: #{tpu_custom_call.1} parent=1 // pred_check
      _
    $region3: #{tpu_custom_call.1} parent=1 // pred_check_branch
      %11 = sbr.rel (0) target = $region5
    $region4: #{tpu_custom_call.1} parent=1 // pred_region
      %s13 = ssub.s32 64, 64
      %14 = vsyncadd [#allocation3], %s13
      %s16 = sshll.u32 [#allocation2], 4
      %s17 = int_to_ptr.vmem [resolvable:$true] %s16
      %19 = dma.hbm_to_vmem [thread:$0]  %s0, 64, %s17, [#allocation3]
    $region5: #{tpu_custom_call.1} parent=1 // pred_fallthru
      _
    // Predicated region
    $region6: #{tpu_custom_call.1} parent=1 // pred_check
      _
    $region7: #{tpu_custom_call.1} parent=1 // pred_check_branch
      %21 = sbr.rel (0) target = $region9
    $region8: #{tpu_custom_call.1} parent=1 // pred_region
      %s23 = ssub.s32 64, 64
      %24 = vsyncadd [#allocation6], %s23
      %s26 = sshll.u32 [#allocation5], 4
      %s27 = int_to_ptr.vmem [resolvable:$true] %s26
      %29 = dma.hbm_to_vmem [thread:$0]  %s1, 64, %s27, [#allocation6]
    $region9: #{tpu_custom_call.1} parent=1 // pred_fallthru
      _
    // Predicated region
    $region10: #{tpu_custom_call.1} parent=1 // pred_check
      _
    $region11: #{tpu_custom_call.1} parent=1 // pred_check_branch
      %31 = sbr.rel (0) target = $region13
    $region12: #{tpu_custom_call.1} parent=1 // pred_region
      %32 = dma.done [#allocation3], 64
    $region13: #{tpu_custom_call.1} parent=1 // pred_fallthru
      _
    // Predicated region
    $region14: #{tpu_custom_call.1} parent=1 // pred_check
      _
    $region15: #{tpu_custom_call.1} parent=1 // pred_check_branch
      %34 = sbr.rel (0) target = $region17
    $region16: #{tpu_custom_call.1} parent=1 // pred_region
      %35 = dma.done [#allocation6], 64
    $region17: #{tpu_custom_call.1} parent=1 // pred_fallthru
      _
    %v36 = vld [vmem:[#allocation2] sm:$0xf]
    %v37 = vld [vmem:[#allocation5] sm:$0xf]
    %v38 = vsub.f32 0.0, %v36
    %v39 = vmax.f32 %v38, 0.0
    %v40 = vand.u32 2147483647, %v36
    %v41 = vsub.f32 0.0, %v40
    %v42 = vmul.f32 %v41, 1.442695
    %v43 = vpow.pop %v42
    %v44 = vadd.f32 %v43, 1.0
    %v45 = vlog2.pop %v44
    %v46 = vmul.f32 %v45, 0.6931472
    %v47 = vmul.f32 -0.5, %v43
    %v48 = vadd.f32 %v47, 1.0
    %v49 = vmul.f32 %v48, %v43
    %v50 = vand.u32 2147483647, %v43
    %vm51 = vcmp.lt.f32.partialorder %v50, 0.0004427343
    %v52 = vsel %vm51, %v49, %v46
    %v53 = vadd.f32 %v39, %v52
    %v54 = vsub.f32 1.0, %v37
    %v55 = vmul.f32 %v54, %v36
    %v56 = vadd.f32 %v55, %v53
    %vm57 = vcmask 1043456
    %v58 = vsel %vm57, %v56, 0.0
    %v59 = vrot.slane %v58, 4
    %v60 = vadd.f32 %v58, %v59
    %v61 = vrot.slane %v60, 2
    %v62 = vadd.f32 %v60, %v61
    %v63 = vrot.slane %v62, 1
    %v64 = vadd.f32 %v62, %v63
    %65 = vst [vmem:[#allocation7] sm:$0x1] %v64
    // Predicated region
    $region18: #{tpu_custom_call.1} parent=1 // pred_check
      _
    $region19: #{tpu_custom_call.1} parent=1 // pred_check_branch
      %67 = sbr.rel (0) target = $region21
    $region20: #{tpu_custom_call.1} parent=1 // pred_region
      %s69 = ssub.s32 16, 16
      %70 = vsyncadd [#allocation4], %s69
      %s72 = sshll.u32 [#allocation7], 4
      %s73 = int_to_ptr.vmem [resolvable:$true] %s72
      %75 = dma.vmem_to_hbm [thread:$0]  %s73, 16, %s2, [#allocation4]
    $region21: #{tpu_custom_call.1} parent=1 // pred_fallthru
      _
    // Predicated region
    $region22: #{tpu_custom_call.1} parent=1 // pred_check
      _
    $region23: #{tpu_custom_call.1} parent=1 // pred_check_branch
      %77 = sbr.rel (0) target = $region25
    $region24: #{tpu_custom_call.1} parent=1 // pred_region
      %78 = dma.done [#allocation4], 16
    $region25: #{tpu_custom_call.1} parent=1 // pred_fallthru
      _
    %79 = vsyncpa [#allocation3], 1
    %80 = vsyncpa [#allocation6], 1
    %81 = vsyncpa [#allocation4], 1

</llo_original>
